<compile_context>
chip_gen: v7x
topology: tpu7x:2x2x1
jax: 0.10.0
libtpu: 0.0.40
codegen_flags: <defaults>
</compile_context>

<pallas_src>
import jax
import jax.numpy as jnp
from jax.experimental import pallas as pl
from jax.experimental.pallas import tpu as pltpu


_CHUNK_ROWS = 512          # rows per in-kernel chunk (512*128*4B = 256 KiB per f32 temp)
_MAX_ROWS_PER_TILE = 8192  # hard cap on the row tile


def _vmem_capacity_bytes():
    """Best-effort physical VMEM capacity; conservative default if unavailable."""
    try:
        info = pltpu.get_tpu_info()
        cap = getattr(info, "vmem_capacity_bytes", None)
        if cap:
            return max(int(cap), 32 * 1024 * 1024)
    except Exception:
        pass
    return 64 * 1024 * 1024  # v7x physical size; safe lower bound for v5e/v6e


def _plan_row_tiling(rows, bytes_per_row, max_rows_per_tile=None):
    """Pick (row_tile, chunk_rows, vmem_cap).

    row_tile is a multiple of 8 (and of chunk_rows) sized so the double-buffered
    input blocks use roughly 1/6 of physical VMEM on the current generation.
    """
    cap = _vmem_capacity_bytes()
    budget = cap // 6
    tr_cap = max(8, min(budget // (2 * bytes_per_row), _MAX_ROWS_PER_TILE))
    if max_rows_per_tile is not None:
        tr_cap = max(8, min(tr_cap, int(max_rows_per_tile)))
    rows8 = max(8, (rows // 8) * 8)   # floor to a sublane multiple; tail is masked
    if rows8 <= _CHUNK_ROWS or tr_cap < 2 * _CHUNK_ROWS:
        tr = min(rows8, (tr_cap // 8) * 8)
        chunk = tr
    else:
        tr = min((tr_cap // _CHUNK_ROWS) * _CHUNK_ROWS,
                 (rows8 // _CHUNK_ROWS) * _CHUNK_ROWS)
        chunk = _CHUNK_ROWS
    return tr, chunk, cap


def _make_kernel(*, tr, chunk, rows, tiles_per_part, need_mask):
    """Kernel over one (1, tr, 128) tile of one (sample, part)."""
    n_chunks = tr // chunk
    groups = chunk // 8

    def kernel(mask_ref, pred_ref, gt_ref, hole_ref, valid_ref, abs_acc, mabs_acc):
        p = pl.program_id(1)
        t = pl.program_id(2)

        # (8,128) per-lane accumulators live across the row-tile axis.
        @pl.when(t == 0)
        def _():
            abs_acc[...] = jnp.zeros_like(abs_acc)
            mabs_acc[...] = jnp.zeros_like(mabs_acc)

        tile_row0 = (p * tiles_per_part + t) * tr

        def accumulate(r0):
            m = mask_ref[0, pl.ds(r0, chunk), :]
            d = (pred_ref[0, pl.ds(r0, chunk), :].astype(jnp.float32)
                 - gt_ref[0, pl.ds(r0, chunk), :].astype(jnp.float32))
            ad = jnp.abs(d)
            if need_mask:
                # Zero the ragged tail of the (partially out-of-bounds) last tile.
                ridx = jax.lax.broadcasted_iota(jnp.int32, (chunk, 128), 0)
                ad = jnp.where(tile_row0 + r0 + ridx < rows, ad, 0.0)
            # Binary mask: |m*d| = select(m, |d|, 0) — no int8->f32 convert/mul.
            mad = jnp.where(m != 0, ad, 0.0)
            abs_acc[...] += ad.reshape(groups, 8, 128).sum(axis=0)
            mabs_acc[...] += mad.reshape(groups, 8, 128).sum(axis=0)

        if n_chunks == 1:
            accumulate(0)
        else:
            def body(c, carry):
                accumulate(pl.multiple_of(c * chunk, 8))
                return carry
            jax.lax.fori_loop(0, n_chunks, body, 0, unroll=True)

        @pl.when(t == pl.num_programs(2) - 1)
        def _():
            # Binary mask: sum|(1-m)*d| = sum|d| - sum|m*d|.
            valid_ref[0, 0] = mabs_acc[...]
            hole_ref[0, 0] = abs_acc[...] - mabs_acc[...]

    return kernel


def criterion_parallel(mask, pred, gt, *, max_rows_per_tile=None):
    """Pallas implementation of CriterionParallel(masked-L1 inpainting criterion).

    Args:
      mask: NCHW binary mask (int8/bool/float with values in {0,1}).
      pred, gt: NCHW arrays (any float dtype) of the same shape as mask.
    Returns:
      dict of scalar f32 losses (already .mean()-reduced, as in
      CriterionParallel.forward).
    """
    # TODO(synk): the hole/valid split assumes a strictly binary mask (as in the
    # repo's inpainting criterion); soft masks would need |(1-m)*d| computed directly.
    B, C, H, W = pred.shape
    assert mask.shape == pred.shape == gt.shape
    chw = C * H * W
    assert chw % 128 == 0, "per-sample size must be lane-aligned (multiple of 128)"
    n_elem = B * chw
    rows = chw // 128

    # Free (view) reshapes — inputs stream in their native dtypes, no upcast copy.
    mask_t = mask.reshape(B, rows, 128)
    pred_t = pred.reshape(B, rows, 128)
    gt_t = gt.reshape(B, rows, 128)

    if rows < 8:
        # Degenerate tiny case only (< 1024 elem/sample): pad the sublane axis to 8.
        # Zero-padded rows (mask=0, pred=gt=0) contribute 0 to both sums.
        pad = ((0, 0), (0, 8 - rows), (0, 0))
        mask_t = jnp.pad(mask_t, pad)
        pred_t = jnp.pad(pred_t, pad)
        gt_t = jnp.pad(gt_t, pad)
        rows = 8

    sum_itemsize = (mask_t.dtype.itemsize + pred_t.dtype.itemsize
                    + gt_t.dtype.itemsize)
    bytes_per_row = 128 * sum_itemsize
    tr, chunk, vmem_cap = _plan_row_tiling(rows, bytes_per_row, max_rows_per_tile)

    t_total = -(-rows // tr)
    # Engage both TensorCores (v7x) even when B == 1 by splitting the row-tile axis.
    n_parts = 2 if (B == 1 and t_total >= 2 and t_total % 2 == 0) else 1
    tiles_per_part = t_total // n_parts
    need_mask = (n_parts * tiles_per_part * tr) != rows

    kernel = _make_kernel(tr=tr, chunk=chunk, rows=rows,
                          tiles_per_part=tiles_per_part, need_mask=need_mask)

    in_spec = pl.BlockSpec((1, tr, 128),
                           lambda b, p, t: (b, p * tiles_per_part + t, 0))
    out_spec = pl.BlockSpec((1, 1, 8, 128), lambda b, p, t: (b, p, 0, 0))

    in_block_bytes = tr * 128 * sum_itemsize
    vmem_needed = 2 * in_block_bytes + 3 * chunk * 128 * 4 + 8 * 8 * 128 * 4
    vmem_limit = int(min(vmem_cap // 2, max(32 * 1024 * 1024, 2 * vmem_needed)))

    cost = pl.CostEstimate(
        flops=5 * B * rows * 128,
        transcendentals=0,
        bytes_accessed=B * rows * 128 * sum_itemsize + 2 * B * n_parts * 8 * 128 * 4,
    )

    hole_p, valid_p = pl.pallas_call(
        kernel,
        out_shape=(
            jax.ShapeDtypeStruct((B, n_parts, 8, 128), jnp.float32),
            jax.ShapeDtypeStruct((B, n_parts, 8, 128), jnp.float32),
        ),
        grid_spec=pltpu.PrefetchScalarGridSpec(
            num_scalar_prefetch=0,
            grid=(B, n_parts, tiles_per_part),
            in_specs=[in_spec, in_spec, in_spec],
            out_specs=(out_spec, out_spec),
            scratch_shapes=[
                pltpu.VMEM((8, 128), jnp.float32),
                pltpu.VMEM((8, 128), jnp.float32),
            ],
        ),
        compiler_params=pltpu.CompilerParams(
            # Batch ("replica") and row-part axes are independent -> shardable
            # across TensorCores; the row-tile axis carries the accumulation.
            dimension_semantics=("parallel", "parallel", "arbitrary"),
            vmem_limit_bytes=vmem_limit,
        ),
        cost_estimate=cost,
    )(mask_t, pred_t, gt_t)

    inv_n = 1.0 / float(n_elem)
    multi_dict = {
        "hole": jnp.sum(hole_p) * inv_n,
        "valid": jnp.sum(valid_p) * inv_n,
    }
    # CriterionParallel.forward: reduce every entry with .mean() (entries are
    # already scalars here -> identity, kept for fidelity).
    # TODO(synk): nn.DataParallel replica scatter/gather has no Pallas meaning;
    # the global mean equals mean-of-replica-means only for equal batch splits.
    for key in multi_dict.keys():
        multi_dict[key] = jnp.mean(multi_dict[key])
    return multi_dict


def _reference(mask, pred, gt):
    m = mask.astype(jnp.float32)
    d = pred.astype(jnp.float32) - gt.astype(jnp.float32)
    return {
        "hole": jnp.mean(jnp.abs((1.0 - m) * d)),
        "valid": jnp.mean(jnp.abs(m * d)),
    }


def _check(out, ref, tag):
    for k in ref:
        o = jax.block_until_ready(out[k])
        r = jax.block_until_ready(ref[k])
        assert jnp.allclose(o, r, rtol=1e-4, atol=1e-5), (tag, k, o, r)


if __name__ == "__main__":
    key = jax.random.PRNGKey(0)

    def make_inputs(k, shape, dtype=jnp.float32):
        k1, k2, k3 = jax.random.split(k, 3)
        pred = jax.random.normal(k1, shape, dtype=jnp.float32).astype(dtype)
        gt = jax.random.normal(k2, shape, dtype=jnp.float32).astype(dtype)
        mask = (jax.random.uniform(k3, shape) > 0.5).astype(jnp.int8)
        return mask, pred, gt

    k0, k1, k2, k3 = jax.random.split(key, 4)

    # 1) Main case: B=2, lane-aligned per-sample size, f32 inputs.
    mask, pred, gt = make_inputs(k0, (2, 4, 32, 32))
    out = criterion_parallel(mask, pred, gt)
    out = {k: jax.block_until_ready(v) for k, v in out.items()}
    _check(out, _reference(mask, pred, gt), "main")

    # 2) Ragged row count (rows=30, not a multiple of 8) with bf16 pred/gt:
    #    exercises the in-kernel tail masking (no wrapper-side padding pass).
    mask, pred, gt = make_inputs(k1, (2, 3, 20, 64), dtype=jnp.bfloat16)
    _check(criterion_parallel(mask, pred, gt), _reference(mask, pred, gt), "ragged")

    # 3) B=1 with several row tiles: exercises the 2-way core-parallel row split.
    mask, pred, gt = make_inputs(k2, (1, 8, 32, 64))
    _check(criterion_parallel(mask, pred, gt, max_rows_per_tile=32),
           _reference(mask, pred, gt), "parts")

    # 4) Tiny per-sample size (< 8 rows): degenerate sublane-pad path.
    mask, pred, gt = make_inputs(k3, (2, 1, 2, 128))
    _check(criterion_parallel(mask, pred, gt), _reference(mask, pred, gt), "tiny")

    print("KERNEL_OK")
</pallas_src>

<mosaic_0001>
module attributes {stable_mosaic.version = 11 : i64} {
  func.func @kernel(%arg0: i32, %arg1: i32, %arg2: i32, %arg3: memref<1x32x128xi8, #tpu.memory_space<vmem>>, %arg4: memref<1x32x128xf32, #tpu.memory_space<vmem>>, %arg5: memref<1x32x128xf32, #tpu.memory_space<vmem>>, %arg6: memref<1x1x8x128xf32, #tpu.memory_space<vmem>>, %arg7: memref<1x1x8x128xf32, #tpu.memory_space<vmem>>, %arg8: memref<8x128xf32, #tpu.memory_space<vmem>>, %arg9: memref<8x128xf32, #tpu.memory_space<vmem>>) attributes {dimension_semantics = [#tpu.dimension_semantics<parallel>, #tpu.dimension_semantics<parallel>, #tpu.dimension_semantics<arbitrary>], iteration_bounds = array<i64: 2, 1, 1>, scalar_prefetch = 0 : i64, scratch_operands = 2 : i64, tpu.core_type = #tpu.core_type<tc>, window_params = [{transform_indices = @transform_0, window_bounds = array<i64: 1, 32, 128>}, {transform_indices = @transform_1, window_bounds = array<i64: 1, 32, 128>}, {transform_indices = @transform_2, window_bounds = array<i64: 1, 32, 128>}, {transform_indices = @transform_3, window_bounds = array<i64: 1, 1, 8, 128>}, {transform_indices = @transform_4, window_bounds = array<i64: 1, 1, 8, 128>}]} {
    %c0_i32 = arith.constant 0 : i32
    %0 = arith.cmpi eq, %arg2, %c0_i32 : i32
    %1 = arith.extui %0 : i1 to i32
    %c0_i32_0 = arith.constant 0 : i32
    %2 = arith.cmpi ne, %1, %c0_i32_0 : i32
    scf.if %2 {
      %cst_21 = arith.constant 0.000000e+00 : f32
      %28 = vector.broadcast %cst_21 : f32 to vector<8x128xf32>
      %c0_22 = arith.constant 0 : index
      %c0_23 = arith.constant 0 : index
      %29 = vector.load %arg8[%c0_22, %c0_23] : memref<8x128xf32, #tpu.memory_space<vmem>>, vector<8x128xf32>
      tpu.vector_store %arg8[%c0_22, %c0_23], %28 {strides = array<i32>} : memref<8x128xf32, #tpu.memory_space<vmem>>, vector<8x128xf32>,
      %cst_24 = arith.constant 0.000000e+00 : f32
      %30 = vector.broadcast %cst_24 : f32 to vector<8x128xf32>
      %c0_25 = arith.constant 0 : index
      %c0_26 = arith.constant 0 : index
      %31 = vector.load %arg9[%c0_25, %c0_26] : memref<8x128xf32, #tpu.memory_space<vmem>>, vector<8x128xf32>
      tpu.vector_store %arg9[%c0_25, %c0_26], %30 {strides = array<i32>} : memref<8x128xf32, #tpu.memory_space<vmem>>, vector<8x128xf32>,
    } else {
    }
    %c0 = arith.constant 0 : index
    %c0_1 = arith.constant 0 : index
    %c0_2 = arith.constant 0 : index
    %3 = vector.load %arg3[%c0, %c0_1, %c0_2] : memref<1x32x128xi8, #tpu.memory_space<vmem>>, vector<1x32x128xi8>
    %4 = vector.shape_cast %3 : vector<1x32x128xi8> to vector<32x128xi8>
    %c0_3 = arith.constant 0 : index
    %c0_4 = arith.constant 0 : index
    %c0_5 = arith.constant 0 : index
    %5 = vector.load %arg4[%c0_3, %c0_4, %c0_5] : memref<1x32x128xf32, #tpu.memory_space<vmem>>, vector<1x32x128xf32>
    %6 = vector.shape_cast %5 : vector<1x32x128xf32> to vector<32x128xf32>
    %c0_6 = arith.constant 0 : index
    %c0_7 = arith.constant 0 : index
    %c0_8 = arith.constant 0 : index
    %7 = vector.load %arg5[%c0_6, %c0_7, %c0_8] : memref<1x32x128xf32, #tpu.memory_space<vmem>>, vector<1x32x128xf32>
    %8 = vector.shape_cast %7 : vector<1x32x128xf32> to vector<32x128xf32>
    %9 = arith.subf %6, %8 : vector<32x128xf32>
    %10 = math.absf %9 : vector<32x128xf32>
    %c0_i8 = arith.constant 0 : i8
    %11 = vector.broadcast %c0_i8 : i8 to vector<32x128xi8>
    %12 = arith.cmpi ne, %4, %11 : vector<32x128xi8>
    %cst = arith.constant 0.000000e+00 : f32
    %13 = vector.broadcast %cst : f32 to vector<32x128xf32>
    %14 = arith.select %12, %10, %13 : vector<32x128xi1>, vector<32x128xf32>
    %c0_9 = arith.constant 0 : index
    %c0_10 = arith.constant 0 : index
    %15 = vector.load %arg8[%c0_9, %c0_10] : memref<8x128xf32, #tpu.memory_space<vmem>>, vector<8x128xf32>
    %16 = vector.shape_cast %10 : vector<32x128xf32> to vector<4x8x128xf32>
    %cst_11 = arith.constant dense<0.000000e+00> : vector<8x128xf32>
    %17 = vector.multi_reduction <add>, %16, %cst_11 [0] : vector<4x8x128xf32> to vector<8x128xf32>
    %18 = arith.addf %15, %17 : vector<8x128xf32>
    %c0_12 = arith.constant 0 : index
    %c0_13 = arith.constant 0 : index
    %19 = vector.load %arg8[%c0_12, %c0_13] : memref<8x128xf32, #tpu.memory_space<vmem>>, vector<8x128xf32>
    tpu.vector_store %arg8[%c0_12, %c0_13], %18 {strides = array<i32>} : memref<8x128xf32, #tpu.memory_space<vmem>>, vector<8x128xf32>,
    %c0_14 = arith.constant 0 : index
    %c0_15 = arith.constant 0 : index
    %20 = vector.load %arg9[%c0_14, %c0_15] : memref<8x128xf32, #tpu.memory_space<vmem>>, vector<8x128xf32>
    %21 = vector.shape_cast %14 : vector<32x128xf32> to vector<4x8x128xf32>
    %cst_16 = arith.constant dense<0.000000e+00> : vector<8x128xf32>
    %22 = vector.multi_reduction <add>, %21, %cst_16 [0] : vector<4x8x128xf32> to vector<8x128xf32>
    %23 = arith.addf %20, %22 : vector<8x128xf32>
    %c0_17 = arith.constant 0 : index
    %c0_18 = arith.constant 0 : index
    %24 = vector.load %arg9[%c0_17, %c0_18] : memref<8x128xf32, #tpu.memory_space<vmem>>, vector<8x128xf32>
    tpu.vector_store %arg9[%c0_17, %c0_18], %23 {strides = array<i32>} : memref<8x128xf32, #tpu.memory_space<vmem>>, vector<8x128xf32>,
    %c0_i32_19 = arith.constant 0 : i32
    %25 = arith.cmpi eq, %arg2, %c0_i32_19 : i32
    %26 = arith.extui %25 : i1 to i32
    %c0_i32_20 = arith.constant 0 : i32
    %27 = arith.cmpi ne, %26, %c0_i32_20 : i32
    scf.if %27 {
      %c0_21 = arith.constant 0 : index
      %c0_22 = arith.constant 0 : index
      %28 = vector.load %arg9[%c0_21, %c0_22] : memref<8x128xf32, #tpu.memory_space<vmem>>, vector<8x128xf32>
      %c0_23 = arith.constant 0 : index
      %c0_24 = arith.constant 0 : index
      %c0_25 = arith.constant 0 : index
      %c0_26 = arith.constant 0 : index
      %29 = vector.load %arg7[%c0_23, %c0_24, %c0_25, %c0_26] : memref<1x1x8x128xf32, #tpu.memory_space<vmem>>, vector<1x1x8x128xf32>
      %30 = vector.shape_cast %29 : vector<1x1x8x128xf32> to vector<8x128xf32>
      %31 = vector.shape_cast %28 : vector<8x128xf32> to vector<1x1x8x128xf32>
      tpu.vector_store %arg7[%c0_23, %c0_24, %c0_25, %c0_26], %31 {strides = array<i32>} : memref<1x1x8x128xf32, #tpu.memory_space<vmem>>, vector<1x1x8x128xf32>,
      %c0_27 = arith.constant 0 : index
      %c0_28 = arith.constant 0 : index
      %32 = vector.load %arg8[%c0_27, %c0_28] : memref<8x128xf32, #tpu.memory_space<vmem>>, vector<8x128xf32>
      %c0_29 = arith.constant 0 : index
      %c0_30 = arith.constant 0 : index
      %33 = vector.load %arg9[%c0_29, %c0_30] : memref<8x128xf32, #tpu.memory_space<vmem>>, vector<8x128xf32>
      %34 = arith.subf %32, %33 : vector<8x128xf32>
      %c0_31 = arith.constant 0 : index
      %c0_32 = arith.constant 0 : index
      %c0_33 = arith.constant 0 : index
      %c0_34 = arith.constant 0 : index
      %35 = vector.load %arg6[%c0_31, %c0_32, %c0_33, %c0_34] : memref<1x1x8x128xf32, #tpu.memory_space<vmem>>, vector<1x1x8x128xf32>
      %36 = vector.shape_cast %35 : vector<1x1x8x128xf32> to vector<8x128xf32>
      %37 = vector.shape_cast %34 : vector<8x128xf32> to vector<1x1x8x128xf32>
      tpu.vector_store %arg6[%c0_31, %c0_32, %c0_33, %c0_34], %37 {strides = array<i32>} : memref<1x1x8x128xf32, #tpu.memory_space<vmem>>, vector<1x1x8x128xf32>,
    } else {
    }
    return
  }
  func.func @transform_0(%arg0: i32, %arg1: i32, %arg2: i32) -> (i32, i32, i32) {
    %c1_i32 = arith.constant 1 : i32
    %0 = arith.muli %arg1, %c1_i32 : i32
    %1 = arith.addi %0, %arg2 : i32
    %c0_i32 = arith.constant 0 : i32
    %c0_i32_0 = arith.constant 0 : i32
    return %arg0, %1, %c0_i32 : i32, i32, i32
  }
  func.func @transform_1(%arg0: i32, %arg1: i32, %arg2: i32) -> (i32, i32, i32) {
    %c1_i32 = arith.constant 1 : i32
    %0 = arith.muli %arg1, %c1_i32 : i32
    %1 = arith.addi %0, %arg2 : i32
    %c0_i32 = arith.constant 0 : i32
    %c0_i32_0 = arith.constant 0 : i32
    return %arg0, %1, %c0_i32 : i32, i32, i32
  }
  func.func @transform_2(%arg0: i32, %arg1: i32, %arg2: i32) -> (i32, i32, i32) {
    %c1_i32 = arith.constant 1 : i32
    %0 = arith.muli %arg1, %c1_i32 : i32
    %1 = arith.addi %0, %arg2 : i32
    %c0_i32 = arith.constant 0 : i32
    %c0_i32_0 = arith.constant 0 : i32
    return %arg0, %1, %c0_i32 : i32, i32, i32
  }
  func.func @transform_3(%arg0: i32, %arg1: i32, %arg2: i32) -> (i32, i32, i32, i32) {
    %c0_i32 = arith.constant 0 : i32
    %c0_i32_0 = arith.constant 0 : i32
    %c0_i32_1 = arith.constant 0 : i32
    return %arg0, %arg1, %c0_i32, %c0_i32_0 : i32, i32, i32, i32
  }
  func.func @transform_4(%arg0: i32, %arg1: i32, %arg2: i32) -> (i32, i32, i32, i32) {
    %c0_i32 = arith.constant 0 : i32
    %c0_i32_0 = arith.constant 0 : i32
    %c0_i32_1 = arith.constant 0 : i32
    return %arg0, %arg1, %c0_i32, %c0_i32_0 : i32, i32, i32, i32
  }
}

</mosaic_0001>

<llo_original>
// kernel: tpu_custom_call.1
$region0: #{tpu_custom_call.1}
  #allocation0 [shape = 'u32[]', space=smem, size = 0x4, offset = 0x4, fixed_abs, tag = 'smem constant byte address 0x4 - core index']
  #allocation1 [shape = 'u32[144,128]{1,0:T(1,128)}', space=vmem, size = 0x12000, scoped, tag = 'internal scratch']
  #allocation2 [shape = 'f32[8,128]{1,0:T(8,128)}', space=vmem, size = 0x1000, scoped, tag = 'scratch operand']
  #allocation3 [shape = 'f32[8,128]{1,0:T(8,128)}', space=vmem, size = 0x1000, scoped, tag = 'scratch operand']
  %s0 = inlined_call_operand.hbm [shape: s8[2,32,128], index: 0, kind: input, shape index: {}]
  %s1 = inlined_call_operand.hbm [shape: f32[2,32,128], index: 1, kind: input, shape index: {}]
  %s2 = inlined_call_operand.hbm [shape: f32[2,32,128], index: 2, kind: input, shape index: {}]
  %s3 = inlined_call_operand.hbm [shape: f32[2,1,8,128], index: 3, kind: output, shape index: {0}]
  %s4 = inlined_call_operand.hbm [shape: f32[2,1,8,128], index: 4, kind: output, shape index: {1}]
  %5 = xla_tuple %s3, %s4
  %s6 = sld [smem:[#allocation0]]
  $region73: #{tpu_custom_call.1} parent=0
    _
  %s8 = ssub.s32 1, %s6
  %s9 = scalar_select 0, %s8, %s6
  $region1: #{tpu_custom_call.1} parent=0
    #allocation4 [shape = 'u8[8192]{0}', space=vmem, size = 0x2000, scoped, tag = 'input window, operand 0']
    #allocation5 [shape = 's32[2]{0}', space=sflag, size = 0x8, scoped, tag = 'scoped memory for tpu_custom_call.1']
    #allocation6 [shape = 's32[2]{0}', space=sflag, size = 0x8, scoped, tag = 'scoped memory for tpu_custom_call.1']
    #allocation7 [shape = 'u8[32768]{0}', space=vmem, size = 0x8000, scoped, tag = 'input window, operand 1']
    #allocation8 [shape = 's32[2]{0}', space=sflag, size = 0x8, scoped, tag = 'scoped memory for tpu_custom_call.1']
    #allocation9 [shape = 'u8[32768]{0}', space=vmem, size = 0x8000, scoped, tag = 'input window, operand 2']
    #allocation10 [shape = 'u8[8192]{0}', space=vmem, size = 0x2000, scoped, tag = 'output window, operand 0']
    #allocation11 [shape = 'u8[8192]{0}', space=vmem, size = 0x2000, scoped, tag = 'output window, operand 1']
    #allocation12 [shape = 's32[2]{0}', space=sflag, size = 0x8, scoped, tag = 'scoped memory for tpu_custom_call.1']
    %10 = vsyncpa [#allocation5], 0
    %s11 = scalar_lea.sflag [#allocation5], 1
    %12 = vsyncpa %s11, 0
    %13 = vsyncpa [#allocation8], 0
    %s14 = scalar_lea.sflag [#allocation8], 1
    %15 = vsyncpa %s14, 0
    %16 = vsyncpa [#allocation6], 0
    %s17 = scalar_lea.sflag [#allocation6], 1
    %18 = vsyncpa %s17, 0
    %19 = vsyncpa [#allocation12], 0
    %s20 = scalar_lea.sflag [#allocation12], 1
    %21 = vsyncpa %s20, 0
    loop: start=0, step=1, limit=4
    $region2: #{tpu_custom_call.1} parent=1 // loop_pre_header
      _
    $region3: #{tpu_custom_call.1} parent=1 // loop_header
      %s23 = sphi 0, %s27
      %p24 = scmp.ge.s32.totalorder %s23, 4
      %s30 = sphi 0, %s49
      %s31 = sphi 0, %s45
      %s32 = sphi 0, %s41
      %s33 = sphi 0, %s30
      %s34 = sphi 0, %s31
      %s35 = sphi 0, %s32
      %s36 = sphi 0, %s33
      %s37 = sphi 0, %s34
      %s38 = sphi 0, %s35
      %s56 = sphi 0, %s58
      %s59 = sphi 0, %s56
      %s60 = sphi 0, %s59
      %s76 = sphi 0, %s60
      %s86 = sphi 0, %s88
      %s89 = sphi 0, %s86
      %s90 = sphi 0, %s89
      %s106 = sphi 0, %s90
      %s116 = sphi 0, %s118
      %s119 = sphi 0, %s116
      %s120 = sphi 0, %s119
      %s136 = sphi 0, %s120
      %s144 = sphi 0, %s146
      %s147 = sphi 0, %s144
      %s148 = sphi 0, %s147
      %s164 = sphi 0, %s148
      %s172 = sphi 0, %s174
      %s175 = sphi 0, %s172
      %s176 = sphi 0, %s175
      %s192 = sphi 0, %s176
    $region4: #{tpu_custom_call.1} parent=1 // loop_header_branch
      %26 = sbr.rel (%p24) target = $region8
    $region5: #{tpu_custom_call.1} parent=1 // loop_body
      %s28 = ssub.s32 %s23, 1
      %s29 = ssub.s32 %s23, 2
      %s39 = sadd.s32 1, %s32
      %p40 = scmp.ge.s32.totalorder %s39, 1
      %s41 = scalar_select %p40, 0, %s39
      %s42 = sadd.s32 1, %s31
      %s43 = scalar_select %p40, %s42, %s31
      %p44 = scmp.ge.s32.totalorder %s43, 1
      %s45 = scalar_select %p44, 0, %s43
      %s46 = sadd.s32 1, %s30
      %s47 = scalar_select %p44, %s46, %s30
      %p48 = scmp.ge.s32.totalorder %s47, 2
      %s49 = scalar_select %p48, 0, %s47
      %s50 = sadd.s32 %s31, %s32
      %s51 = sadd.s32 %s45, %s41
      %s52 = ssub.s32 %s30, %s49
      %s53 = ssub.s32 %s50, %s51
      %s54 = sor.u32 %s52, %s53
      %p55 = scmp.eq.s32.totalorder %s54, 0
      %s57 = sadd.s32 %s56, 1
      %s58 = scalar_select %p55, %s56, %s57
      %p61 = pneg %p55
      %p62 = scmp.eq.s32.totalorder %s23, 1
      %p63 = por %p61, %p62
      %p64 = scmp.ne.s32.totalorder %s56, %s59
      %p65 = scmp.eq.s32.totalorder %s23, 0
      %p66 = por %p64, %p65
      %p67 = scmp.ne.s32.totalorder %s56, %s59
      %p68 = scmp.eq.s32.totalorder %s28, 1
      %p69 = por %p67, %p68
      %p70 = scmp.ne.s32.totalorder %s59, %s60
      %p71 = scmp.eq.s32.totalorder %s28, 0
      %p72 = por %p70, %p71
      %p73 = scmp.ne.s32.totalorder %s59, %s60
      %p74 = scmp.eq.s32.totalorder %s29, 1
      %p75 = por %p73, %p74
      %p77 = scmp.ne.s32.totalorder %s60, %s76
      %p78 = scmp.eq.s32.totalorder %s29, 0
      %p79 = por %p77, %p78
      %s80 = sadd.s32 %s31, %s32
      %s81 = sadd.s32 %s45, %s41
      %s82 = ssub.s32 %s30, %s49
      %s83 = ssub.s32 %s80, %s81
      %s84 = sor.u32 %s82, %s83
      %p85 = scmp.eq.s32.totalorder %s84, 0
      %s87 = sadd.s32 %s86, 1
      %s88 = scalar_select %p85, %s86, %s87
      %p91 = pneg %p85
      %p92 = scmp.eq.s32.totalorder %s23, 1
      %p93 = por %p91, %p92
      %p94 = scmp.ne.s32.totalorder %s86, %s89
      %p95 = scmp.eq.s32.totalorder %s23, 0
      %p96 = por %p94, %p95
      %p97 = scmp.ne.s32.totalorder %s86, %s89
      %p98 = scmp.eq.s32.totalorder %s28, 1
      %p99 = por %p97, %p98
      %p100 = scmp.ne.s32.totalorder %s89, %s90
      %p101 = scmp.eq.s32.totalorder %s28, 0
      %p102 = por %p100, %p101
      %p103 = scmp.ne.s32.totalorder %s89, %s90
      %p104 = scmp.eq.s32.totalorder %s29, 1
      %p105 = por %p103, %p104
      %p107 = scmp.ne.s32.totalorder %s90, %s106
      %p108 = scmp.eq.s32.totalorder %s29, 0
      %p109 = por %p107, %p108
      %s110 = sadd.s32 %s31, %s32
      %s111 = sadd.s32 %s45, %s41
      %s112 = ssub.s32 %s30, %s49
      %s113 = ssub.s32 %s110, %s111
      %s114 = sor.u32 %s112, %s113
      %p115 = scmp.eq.s32.totalorder %s114, 0
      %s117 = sadd.s32 %s116, 1
      %s118 = scalar_select %p115, %s116, %s117
      %p121 = pneg %p115
      %p122 = scmp.eq.s32.totalorder %s23, 1
      %p123 = por %p121, %p122
      %p124 = scmp.ne.s32.totalorder %s116, %s119
      %p125 = scmp.eq.s32.totalorder %s23, 0
      %p126 = por %p124, %p125
      %p127 = scmp.ne.s32.totalorder %s116, %s119
      %p128 = scmp.eq.s32.totalorder %s28, 1
      %p129 = por %p127, %p128
      %p130 = scmp.ne.s32.totalorder %s119, %s120
      %p131 = scmp.eq.s32.totalorder %s28, 0
      %p132 = por %p130, %p131
      %p133 = scmp.ne.s32.totalorder %s119, %s120
      %p134 = scmp.eq.s32.totalorder %s29, 1
      %p135 = por %p133, %p134
      %p137 = scmp.ne.s32.totalorder %s120, %s136
      %p138 = scmp.eq.s32.totalorder %s29, 0
      %p139 = por %p137, %p138
      %s140 = ssub.s32 %s30, %s49
      %s141 = ssub.s32 %s31, %s45
      %s142 = sor.u32 %s140, %s141
      %p143 = scmp.eq.s32.totalorder %s142, 0
      %s145 = sadd.s32 %s144, 1
      %s146 = scalar_select %p143, %s144, %s145
      %p149 = pneg %p143
      %p150 = scmp.eq.s32.totalorder %s23, 1
      %p151 = por %p149, %p150
      %p152 = scmp.ne.s32.totalorder %s144, %s147
      %p153 = scmp.eq.s32.totalorder %s23, 0
      %p154 = por %p152, %p153
      %p155 = scmp.ne.s32.totalorder %s144, %s147
      %p156 = scmp.eq.s32.totalorder %s28, 1
      %p157 = por %p155, %p156
      %p158 = scmp.ne.s32.totalorder %s147, %s148
      %p159 = scmp.eq.s32.totalorder %s28, 0
      %p160 = por %p158, %p159
      %p161 = scmp.ne.s32.totalorder %s147, %s148
      %p162 = scmp.eq.s32.totalorder %s29, 1
      %p163 = por %p161, %p162
      %p165 = scmp.ne.s32.totalorder %s148, %s164
      %p166 = scmp.eq.s32.totalorder %s29, 0
      %p167 = por %p165, %p166
      %s168 = ssub.s32 %s30, %s49
      %s169 = ssub.s32 %s31, %s45
      %s170 = sor.u32 %s168, %s169
      %p171 = scmp.eq.s32.totalorder %s170, 0
      %s173 = sadd.s32 %s172, 1
      %s174 = scalar_select %p171, %s172, %s173
      %p177 = pneg %p171
      %p178 = scmp.eq.s32.totalorder %s23, 1
      %p179 = por %p177, %p178
      %p180 = scmp.ne.s32.totalorder %s172, %s175
      %p181 = scmp.eq.s32.totalorder %s23, 0
      %p182 = por %p180, %p181
      %p183 = scmp.ne.s32.totalorder %s172, %s175
      %p184 = scmp.eq.s32.totalorder %s28, 1
      %p185 = por %p183, %p184
      %p186 = scmp.ne.s32.totalorder %s175, %s176
      %p187 = scmp.eq.s32.totalorder %s28, 0
      %p188 = por %p186, %p187
      %p189 = scmp.ne.s32.totalorder %s175, %s176
      %p190 = scmp.eq.s32.totalorder %s29, 1
      %p191 = por %p189, %p190
      %p193 = scmp.ne.s32.totalorder %s176, %s192
      %p194 = scmp.eq.s32.totalorder %s29, 0
      %p195 = por %p193, %p194
      %p196 = scmp.le.s32.totalorder 1, %s23
      %p197 = scmp.lt.s32.totalorder %s23, 3
      %p198 = pnand %p196, %p197
      %p199 = pneg %p198
      // Predicated region
      $region9: #{tpu_custom_call.1} parent=5 // pred_check
        _
      $region10: #{tpu_custom_call.1} parent=5 // pred_check_branch
        %201 = sbr.rel (%p198) target = $region12
      $region11: #{tpu_custom_call.1} parent=5 // pred_region
        %s202 = ssub.s32 %s23, 1
      $region12: #{tpu_custom_call.1} parent=5 // pred_fallthru
        _
      %p203 = scmp.lt.s32.totalorder %s23, 2
      // Predicated region
      $region13: #{tpu_custom_call.1} parent=5 // pred_check
        %p204 = pneg %p203
      $region14: #{tpu_custom_call.1} parent=5 // pred_check_branch
        %206 = sbr.rel (%p204) target = $region16
      $region15: #{tpu_custom_call.1} parent=5 // pred_region
        // Predicated region
        $region17: #{tpu_custom_call.1} parent=15 // pred_check
          %p207 = pneg %p66
        $region18: #{tpu_custom_call.1} parent=15 // pred_check_branch
          %209 = sbr.rel (%p207) target = $region20
        $region19: #{tpu_custom_call.1} parent=15 // pred_region
          %s210 = sand.u32 %s56, 1
          %s211 = scalar_lea.sflag [#allocation5], %s210
          %s212 = sand.u32 %s56, 1
          %s213 = smul.addr %s212, 8
          %s214 = scalar_lea.vmem [#allocation4], %s213
          %s215 = sadd.s32 %s31, %s32
          %s217 = ssub.s32 128, 128
          %218 = vsyncadd %s211, %s217
          %s219 = sadd.s32 %s215, %s30
          %s220 = smul.addr %s219, 128
          %s221 = scalar_lea.hbm %s0, %s220
          %s223 = sshll.u32 %s214, 4
          %s224 = int_to_ptr.vmem [resolvable:$true] %s223
          %226 = dma.hbm_to_vmem [thread:$0]  %s221, 128, %s224, %s211
        $region20: #{tpu_custom_call.1} parent=15 // pred_fallthru
          _
        // Predicated region
        $region21: #{tpu_custom_call.1} parent=15 // pred_check
          %p227 = pneg %p96
        $region22: #{tpu_custom_call.1} parent=15 // pred_check_branch
          %229 = sbr.rel (%p227) target = $region24
        $region23: #{tpu_custom_call.1} parent=15 // pred_region
          %s230 = sand.u32 %s23, 1
          %s231 = scalar_lea.sflag [#allocation8], %s230
          %s232 = sand.u32 %s86, 1
          %s233 = smul.addr %s232, 32
          %s234 = scalar_lea.vmem [#allocation7], %s233
          %s235 = sadd.s32 %s31, %s32
          %s236 = smul.u32 4, %s235
          %s238 = ssub.s32 512, 512
          %239 = vsyncadd %s231, %s238
          %s240 = smul.addr %s30, 4
          %s241 = sadd.s32 %s236, %s240
          %s242 = smul.addr %s241, 128
          %s243 = scalar_lea.hbm %s1, %s242
          %s244 = sshll.u32 %s234, 4
          %s245 = int_to_ptr.vmem [resolvable:$true] %s244
          %250 = dma.hbm_to_vmem [thread:$0]  %s243, 512, %s245, %s231, 128, 128, 8
        $region24: #{tpu_custom_call.1} parent=15 // pred_fallthru
          _
        // Predicated region
        $region25: #{tpu_custom_call.1} parent=15 // pred_check
          %p251 = pneg %p126
        $region26: #{tpu_custom_call.1} parent=15 // pred_check_branch
          %253 = sbr.rel (%p251) target = $region28
        $region27: #{tpu_custom_call.1} parent=15 // pred_region
          %s254 = sand.u32 %s23, 1
          %s255 = scalar_lea.sflag [#allocation8], %s254
          %s256 = sand.u32 %s116, 1
          %s257 = smul.addr %s256, 32
          %s258 = scalar_lea.vmem [#allocation9], %s257
          %s259 = sadd.s32 %s31, %s32
          %s260 = smul.u32 4, %s259
          %s262 = ssub.s32 512, 512
          %263 = vsyncadd %s255, %s262
          %s264 = smul.addr %s30, 4
          %s265 = sadd.s32 %s260, %s264
          %s266 = smul.addr %s265, 128
          %s267 = scalar_lea.hbm %s2, %s266
          %s268 = sshll.u32 %s258, 4
          %s269 = int_to_ptr.vmem [resolvable:$true] %s268
          %274 = dma.hbm_to_vmem [thread:$0]  %s267, 512, %s269, %s255, 128, 128, 8
        $region28: #{tpu_custom_call.1} parent=15 // pred_fallthru
          _
      $region16: #{tpu_custom_call.1} parent=5 // pred_fallthru
        _
      %p275 = scmp.le.s32.totalorder 1, %s23
      %p276 = scmp.lt.s32.totalorder %s23, 3
      %p277 = pnand %p275, %p276
      %p278 = pneg %p277
      // Predicated region
      $region29: #{tpu_custom_call.1} parent=5 // pred_check
        _
      $region30: #{tpu_custom_call.1} parent=5 // pred_check_branch
        %280 = sbr.rel (%p277) target = $region32
      $region31: #{tpu_custom_call.1} parent=5 // pred_region
        %s281 = ssub.s32 %s23, 1
        %s282 = sand.u32 %s59, 1
        %s283 = scalar_lea.sflag [#allocation5], %s282
        %s284 = sand.u32 %s59, 1
        %s285 = smul.addr %s284, 8
        %s286 = scalar_lea.vmem [#allocation4], %s285
        // Predicated region
        $region33: #{tpu_custom_call.1} parent=31 // pred_check
          %p287 = pneg %p72
        $region34: #{tpu_custom_call.1} parent=31 // pred_check_branch
          %289 = sbr.rel (%p287) target = $region36
        $region35: #{tpu_custom_call.1} parent=31 // pred_region
          %290 = dma.done %s283, 128
        $region36: #{tpu_custom_call.1} parent=31 // pred_fallthru
          _
        %s291 = sand.u32 %s28, 1
        %s292 = scalar_lea.sflag [#allocation8], %s291
        %s293 = sand.u32 %s89, 1
        %s294 = smul.addr %s293, 32
        %s295 = scalar_lea.vmem [#allocation7], %s294
        // Predicated region
        $region37: #{tpu_custom_call.1} parent=31 // pred_check
          %p296 = pneg %p102
        $region38: #{tpu_custom_call.1} parent=31 // pred_check_branch
          %298 = sbr.rel (%p296) target = $region40
        $region39: #{tpu_custom_call.1} parent=31 // pred_region
          %299 = dma.done %s292, 512
        $region40: #{tpu_custom_call.1} parent=31 // pred_fallthru
          _
        %s300 = sand.u32 %s28, 1
        %s301 = scalar_lea.sflag [#allocation8], %s300
        %s302 = sand.u32 %s119, 1
        %s303 = smul.addr %s302, 32
        %s304 = scalar_lea.vmem [#allocation9], %s303
        // Predicated region
        $region41: #{tpu_custom_call.1} parent=31 // pred_check
          %p305 = pneg %p132
        $region42: #{tpu_custom_call.1} parent=31 // pred_check_branch
          %307 = sbr.rel (%p305) target = $region44
        $region43: #{tpu_custom_call.1} parent=31 // pred_region
          %308 = dma.done %s301, 512
        $region44: #{tpu_custom_call.1} parent=31 // pred_fallthru
          _
        %s309 = sand.u32 %s59, 1
        %s310 = scalar_lea.sflag [#allocation5], %s309
        %s311 = sand.u32 %s59, 1
        %s312 = smul.addr %s311, 8
        %s313 = scalar_lea.vmem [#allocation4], %s312
        %p314 = pneg %p72
        %p315 = pneg %p69
        %s316 = sand.u32 %s28, 1
        %s317 = scalar_lea.sflag [#allocation8], %s316
        %s318 = sand.u32 %s89, 1
        %s319 = smul.addr %s318, 32
        %s320 = scalar_lea.vmem [#allocation7], %s319
        %p321 = pneg %p102
        %p322 = pneg %p99
        %s323 = sand.u32 %s28, 1
        %s324 = scalar_lea.sflag [#allocation8], %s323
        %s325 = sand.u32 %s119, 1
        %s326 = smul.addr %s325, 32
        %s327 = scalar_lea.vmem [#allocation9], %s326
        %p328 = pneg %p132
        %p329 = pneg %p129
        %p330 = pneg %p160
        %p331 = pneg %p157
        %s332 = sand.u32 %s147, 1
        %s333 = scalar_lea.sflag [#allocation6], %s332
        %s334 = sand.u32 %s147, 1
        %s335 = smul.addr %s334, 8
        %s336 = scalar_lea.vmem [#allocation10], %s335
        %p337 = pneg %p188
        %p338 = pneg %p185
        %s339 = sand.u32 %s175, 1
        %s340 = scalar_lea.sflag [#allocation12], %s339
        %s341 = sand.u32 %s175, 1
        %s342 = smul.addr %s341, 8
        %s343 = scalar_lea.vmem [#allocation11], %s342
        %s344 = sadd.s32 %s34, %s35
        %s345 = sadd.s32 %s34, %s35
        %s346 = smul.u32 4, %s345
        %s347 = sadd.s32 %s34, %s35
        %s348 = smul.u32 4, %s347
        %p351 = scmp.eq.s32.totalorder %s35, 0
        // Predicated region
        $region45: #{tpu_custom_call.1} parent=31 // pred_check
          %p352 = pneg %p351
        $region46: #{tpu_custom_call.1} parent=31 // pred_check_branch
          %354 = sbr.rel (%p352) target = $region48
        $region47: #{tpu_custom_call.1} parent=31 // pred_region
          %355 = vst [vmem:[#allocation2] sm:$0xff] 0.0
          %356 = vst [vmem:[#allocation3] sm:$0xff] 0.0
        $region48: #{tpu_custom_call.1} parent=31 // pred_fallthru
          _
        %v357 = vld [vmem:[%s286] sm:$0xff]
        %v358 = vld [vmem:[%s295] sm:$0xff]
        %v359 = vld [vmem:[%s295 + $0x8] sm:$0xff]
        %v360 = vld [vmem:[%s295 + $0x10] sm:$0xff]
        %v361 = vld [vmem:[%s295 + $0x18] sm:$0xff]
        %v362 = vld [vmem:[%s304] sm:$0xff]
        %v363 = vld [vmem:[%s304 + $0x8] sm:$0xff]
        %v364 = vld [vmem:[%s304 + $0x10] sm:$0xff]
        %v365 = vld [vmem:[%s304 + $0x18] sm:$0xff]
        %v366 = vsub.f32 %v358, %v362
        %v367 = vsub.f32 %v359, %v363
        %v368 = vsub.f32 %v360, %v364
        %v369 = vsub.f32 %v361, %v365
        %v370 = vand.u32 2147483647, %v366
        %v371 = vand.u32 2147483647, %v367
        %v372 = vand.u32 2147483647, %v368
        %v373 = vand.u32 2147483647, %v369
        %vm374 = vnez %v357
        %v375 = vsel %vm374, 16843009, 0
        %v376 = vunpack.c.0.s8 %v375
        %v377 = vunpack.c.1.s8 %v375
        %v378 = vunpack.c.2.s8 %v375
        %v379 = vunpack.c.3.s8 %v375
        %v380 = vpack.c.b16 %v376, %v376
        %v381 = vpack.c.b8 %v380, %v380
        %v382 = vpack.c.b16 %v377, %v377
        %v383 = vpack.c.b8 %v382, %v382
        %v384 = vpack.c.b16 %v378, %v378
        %v385 = vpack.c.b8 %v384, %v384
        %v386 = vpack.c.b16 %v379, %v379
        %v387 = vpack.c.b8 %v386, %v386
        %vm388 = vnez %v381
        %vm389 = vnez %v383
        %vm390 = vnez %v385
        %vm391 = vnez %v387
        %v392 = vsel %vm388, 16843009, 0
        %v393 = vsel %vm389, 16843009, 0
        %v394 = vsel %vm390, 16843009, 0
        %v395 = vsel %vm391, 16843009, 0
        %v396 = vunpack.c.0.s8 %v392
        %v397 = vunpack.c.0.s8 %v393
        %v398 = vunpack.c.0.s8 %v394
        %v399 = vunpack.c.0.s8 %v395
        %vm400 = vcmp.ne.s32.totalorder %v396, 0
        %vm401 = vcmp.ne.s32.totalorder %v397, 0
        %vm402 = vcmp.ne.s32.totalorder %v398, 0
        %vm403 = vcmp.ne.s32.totalorder %v399, 0
        %v404 = vsel %vm400, %v370, 0.0
        %v405 = vsel %vm401, %v371, 0.0
        %v406 = vsel %vm402, %v372, 0.0
        %v407 = vsel %vm403, %v373, 0.0
        %v408 = vld [vmem:[#allocation2] sm:$0xff]
        %v409 = vadd.f32 %v370, %v371
        %v410 = vadd.f32 %v409, %v372
        %v411 = vadd.f32 %v410, %v373
        %v412 = vadd.f32 %v408, %v411
        %413 = vst [vmem:[#allocation2] sm:$0xff] %v412
        %v414 = vld [vmem:[#allocation3] sm:$0xff]
        %v415 = vadd.f32 %v404, %v405
        %v416 = vadd.f32 %v415, %v406
        %v417 = vadd.f32 %v416, %v407
        %v418 = vadd.f32 %v414, %v417
        %419 = vst [vmem:[#allocation3] sm:$0xff] %v418
        // Predicated region
        $region49: #{tpu_custom_call.1} parent=31 // pred_check
          %p420 = pneg %p351
        $region50: #{tpu_custom_call.1} parent=31 // pred_check_branch
          %422 = sbr.rel (%p420) target = $region52
        $region51: #{tpu_custom_call.1} parent=31 // pred_region
          %v423 = vld [vmem:[#allocation3] sm:$0xff]
          %424 = vst [vmem:[%s343] sm:$0xff] %v423
          %v425 = vld [vmem:[#allocation2] sm:$0xff]
          %v426 = vld [vmem:[#allocation3] sm:$0xff]
          %v427 = vsub.f32 %v425, %v426
          %428 = vst [vmem:[%s336] sm:$0xff] %v427
        $region52: #{tpu_custom_call.1} parent=31 // pred_fallthru
          _
        %s429 = sand.u32 %s147, 1
        %s430 = scalar_lea.sflag [#allocation6], %s429
        %s431 = sand.u32 %s147, 1
        %s432 = smul.addr %s431, 8
        %s433 = scalar_lea.vmem [#allocation10], %s432
        %s434 = sand.u32 %s175, 1
        %s435 = scalar_lea.sflag [#allocation12], %s434
        %s436 = sand.u32 %s175, 1
        %s437 = smul.addr %s436, 8
        %s438 = scalar_lea.vmem [#allocation11], %s437
        // Predicated region
        $region53: #{tpu_custom_call.1} parent=31 // pred_check
          %p439 = pneg %p157
        $region54: #{tpu_custom_call.1} parent=31 // pred_check_branch
          %441 = sbr.rel (%p439) target = $region56
        $region55: #{tpu_custom_call.1} parent=31 // pred_region
          %s443 = ssub.s32 128, 128
          %444 = vsyncadd %s430, %s443
          %s445 = sadd.s32 %s34, %s33
          %s446 = smul.addr %s445, 128
          %s447 = scalar_lea.hbm %s3, %s446
          %s449 = sshll.u32 %s433, 4
          %s450 = int_to_ptr.vmem [resolvable:$true] %s449
          %452 = dma.vmem_to_hbm [thread:$0]  %s450, 128, %s447, %s430
        $region56: #{tpu_custom_call.1} parent=31 // pred_fallthru
          _
        // Predicated region
        $region57: #{tpu_custom_call.1} parent=31 // pred_check
          %p453 = pneg %p185
        $region58: #{tpu_custom_call.1} parent=31 // pred_check_branch
          %455 = sbr.rel (%p453) target = $region60
        $region59: #{tpu_custom_call.1} parent=31 // pred_region
          %s457 = ssub.s32 128, 128
          %458 = vsyncadd %s435, %s457
          %s459 = sadd.s32 %s34, %s33
          %s460 = smul.addr %s459, 128
          %s461 = scalar_lea.hbm %s4, %s460
          %s463 = sshll.u32 %s438, 4
          %s464 = int_to_ptr.vmem [resolvable:$true] %s463
          %466 = dma.vmem_to_hbm [thread:$0]  %s464, 128, %s461, %s435
        $region60: #{tpu_custom_call.1} parent=31 // pred_fallthru
          _
      $region32: #{tpu_custom_call.1} parent=5 // pred_fallthru
        _
      %p467 = scmp.le.s32.totalorder 2, %s23
      // Predicated region
      $region61: #{tpu_custom_call.1} parent=5 // pred_check
        %p468 = pneg %p467
      $region62: #{tpu_custom_call.1} parent=5 // pred_check_branch
        %470 = sbr.rel (%p468) target = $region64
      $region63: #{tpu_custom_call.1} parent=5 // pred_region
        %s471 = ssub.s32 %s23, 2
        // Predicated region
        $region65: #{tpu_custom_call.1} parent=63 // pred_check
          %p472 = pneg %p163
        $region66: #{tpu_custom_call.1} parent=63 // pred_check_branch
          %474 = sbr.rel (%p472) target = $region68
        $region67: #{tpu_custom_call.1} parent=63 // pred_region
          %s475 = sand.u32 %s148, 1
          %s476 = scalar_lea.sflag [#allocation6], %s475
          %s477 = sand.u32 %s148, 1
          %s478 = smul.addr %s477, 8
          %s479 = scalar_lea.vmem [#allocation10], %s478
          %480 = dma.done %s476, 128
        $region68: #{tpu_custom_call.1} parent=63 // pred_fallthru
          _
        // Predicated region
        $region69: #{tpu_custom_call.1} parent=63 // pred_check
          %p481 = pneg %p191
        $region70: #{tpu_custom_call.1} parent=63 // pred_check_branch
          %483 = sbr.rel (%p481) target = $region72
        $region71: #{tpu_custom_call.1} parent=63 // pred_region
          %s484 = sand.u32 %s176, 1
          %s485 = scalar_lea.sflag [#allocation12], %s484
          %s486 = sand.u32 %s176, 1
          %s487 = smul.addr %s486, 8
          %s488 = scalar_lea.vmem [#allocation11], %s487
          %489 = dma.done %s485, 128
        $region72: #{tpu_custom_call.1} parent=63 // pred_fallthru
          _
      $region64: #{tpu_custom_call.1} parent=5 // pred_fallthru
        _
    $region6: #{tpu_custom_call.1} parent=1 // loop_footer
      %s27 = sadd.s32 1, %s23
    $region7: #{tpu_custom_call.1} parent=1 // loop_footer_branch
      %22 = sbr.rel target = $region3
    $region8: #{tpu_custom_call.1} parent=1 // loop_exit
      _
    %490 = vsyncpa [#allocation5], 1
    %s491 = scalar_lea.sflag [#allocation5], 1
    %492 = vsyncpa %s491, 1
    %493 = vsyncpa [#allocation8], 1
    %s494 = scalar_lea.sflag [#allocation8], 1
    %495 = vsyncpa %s494, 1
    %496 = vsyncpa [#allocation6], 1
    %s497 = scalar_lea.sflag [#allocation6], 1
    %498 = vsyncpa %s497, 1
    %499 = vsyncpa [#allocation12], 1
    %s500 = scalar_lea.sflag [#allocation12], 1
    %501 = vsyncpa %s500, 1

</llo_original>
